<compile_context>
chip_gen: v7x
topology: tpu7x:2x2x1
jax: 0.10.0
libtpu: 0.0.40
codegen_flags: <defaults>
</compile_context>

<pallas_src>
import jax
import jax.numpy as jnp
from jax.experimental import pallas as pl
from jax.experimental.pallas import tpu as pltpu

BN_EPS = 1e-5
LANE = 128
NUM_STATS_SHARDS = 2      # leading "parallel" axis for phase 1 (v7x has 2 TensorCores)


# ----------------------------- Pallas kernels -----------------------------

def conv_stats_kernel(pt_ref, wt_ref, sum_ref, sumsq_ref):
    """Phase 1: channel-major conv tile on the MXU + per-channel sum / sum-of-squares.

    pt_ref:  [K, TM]  bf16 transposed patch tile (M lane-dense)
    wt_ref:  [CP, K]  bf16 transposed weights (CP = Cout rounded up to 8)
    sum_ref / sumsq_ref: [1, CP, 128] f32 per-shard lane-blocked accumulators,
        VMEM-resident across the inner (M) grid axis.
    """
    @pl.when(pl.program_id(1) == 0)
    def _init():
        sum_ref[...] = jnp.zeros_like(sum_ref)
        sumsq_ref[...] = jnp.zeros_like(sumsq_ref)

    y = jnp.dot(wt_ref[...], pt_ref[...], preferred_element_type=jnp.float32)  # [CP, TM]
    cp, tm = y.shape
    s = jnp.zeros((cp, LANE), jnp.float32)
    sq = jnp.zeros((cp, LANE), jnp.float32)
    # Pure VPU adds over vreg-aligned 128-lane chunks; the final 128->1 lane reduction is
    # done once in the wrapper instead of a cross-lane XLU reduce per tile.
    for j in range(tm // LANE):
        chunk = y[:, j * LANE:(j + 1) * LANE]
        s = s + chunk
        sq = sq + chunk * chunk
    sum_ref[0] += s
    sumsq_ref[0] += sq


def conv_bn_relu_kernel(pt_ref, wt_ref, scale_ref, shift_ref, o_ref):
    """Phase 2: channel-major conv tile on the MXU + fused BN affine + ReLU."""
    y = jnp.dot(wt_ref[...], pt_ref[...], preferred_element_type=jnp.float32)  # [CP, TM]
    # scale/shift are [CP, 1]; lane-broadcast against the [CP, TM] tile.
    o_ref[...] = jnp.maximum(y * scale_ref[...] + shift_ref[...], 0.0).astype(o_ref.dtype)


# ------------------------------ JAX wrapper --------------------------------

def _im2col_transposed(x_nhwc, kh, kw, m_pad):
    """Channel-major im2col for stride=1, padding=0 (PyTorch Conv2d defaults).

    Returns [K, m_pad] with K ordered (kh, kw, cin) and M ordered (n, ho, wo).  Input is
    already bf16 so the materialized patch array is half the bytes of an f32 im2col; the
    M padding is folded into the same producer.
    """
    n, h, w, c = x_nhwc.shape
    ho, wo = h - kh + 1, w - kw + 1
    m = n * ho * wo
    taps = [x_nhwc[:, i:i + ho, j:j + wo, :] for i in range(kh) for j in range(kw)]
    pt = jnp.stack(taps, axis=0)                 # [KH*KW, N, Ho, Wo, C]
    pt = jnp.moveaxis(pt, -1, 1)                 # [KH*KW, C, N, Ho, Wo]
    pt = pt.reshape(kh * kw * c, m)              # [K, M]
    return jnp.pad(pt, ((0, 0), (0, m_pad - m))), (n, ho, wo)


def conv_block_forward(x_nchw, conv_w, conv_b, bn_gamma, bn_beta, *, tm=2048,
                       out_dtype=jnp.float32):
    """x_nchw: [N, Cin, H, W]; conv_w: [Cout, Cin, KH, KW] (PyTorch layouts)."""
    del conv_b  # exactly cancelled by BN's batch-mean subtraction (dead compute + DMA)
    # TODO(synk): if BatchNorm running-stat updates are ever added, the bias must be
    # reintroduced for the running_mean path.
    assert tm % LANE == 0
    cout, cin, kh, kw = conv_w.shape
    n, _, h, w = x_nchw.shape
    ho, wo = h - kh + 1, w - kw + 1
    m = n * ho * wo
    k = kh * kw * cin
    cp = -(-cout // 8) * 8                       # channel-compact: pad only to 8 sublanes

    # Round M up so it splits evenly into NUM_STATS_SHARDS * tm tiles; zero columns add
    # nothing to the statistics and their outputs are sliced off below.
    m_pad = -(-m // (NUM_STATS_SHARDS * tm)) * (NUM_STATS_SHARDS * tm)
    num_tiles = m_pad // tm
    tiles_per_shard = num_tiles // NUM_STATS_SHARDS

    # bf16 cast happens *before* im2col so the only wrapper-side round trip left is bf16.
    # TODO(synk): fold im2col into the kernel (per-tap accumulation from an NHWC block via
    # manual DMA) to remove the KH*KW x HBM read inflation entirely.
    x_nhwc = jnp.transpose(x_nchw, (0, 2, 3, 1)).astype(jnp.bfloat16)
    patches_t, _ = _im2col_transposed(x_nhwc, kh, kw, m_pad)        # [K, m_pad] bf16

    # Weights channel-major [CP, K], K ordered (kh, kw, cin) to match the patches.
    w_t = jnp.transpose(conv_w, (0, 2, 3, 1)).reshape(cout, k)
    w_t = jnp.pad(w_t, ((0, cp - cout), (0, 0))).astype(jnp.bfloat16)

    vmem_limit = 32 * 1024 * 1024   # footprint at tm=2048 is <1 MiB; safe on all gens

    # ---- Phase 1: per-channel sum / sum-of-squares, M tiled, sharded over 2 cores ----
    acc_spec = pl.BlockSpec((1, cp, LANE), lambda c, i: (c, 0, 0))
    s_part, sq_part = pl.pallas_call(
        conv_stats_kernel,
        grid=(NUM_STATS_SHARDS, tiles_per_shard),
        in_specs=[pl.BlockSpec((k, tm), lambda c, i: (0, c * tiles_per_shard + i)),
                  pl.BlockSpec((cp, k), lambda c, i: (0, 0))],
        out_specs=(acc_spec, acc_spec),
        out_shape=(jax.ShapeDtypeStruct((NUM_STATS_SHARDS, cp, LANE), jnp.float32),
                   jax.ShapeDtypeStruct((NUM_STATS_SHARDS, cp, LANE), jnp.float32)),
        compiler_params=pltpu.CompilerParams(
            dimension_semantics=("parallel", "arbitrary"),
            vmem_limit_bytes=vmem_limit),
    )(patches_t, w_t)

    # Finalize statistics (tiny glue math) and fold gamma/beta into a single scale/shift
    # so the phase-2 epilogue is one FMA + ReLU per element.
    # TODO(synk): E[y^2]-mean^2 in f32 is cancellation-prone when |mean| >> std at very
    # large M; switch to a Welford-style (count, mean, M2) per-tile combine if needed.
    s = jnp.sum(s_part, axis=(0, 2))                       # [CP]
    sq = jnp.sum(sq_part, axis=(0, 2))
    mean = s / m
    var = jnp.maximum(sq / m - mean * mean, 0.0)           # biased var (PyTorch BN norm)
    inv_std = jax.lax.rsqrt(var + BN_EPS)
    gamma = jnp.pad(bn_gamma, (0, cp - cout))
    beta = jnp.pad(bn_beta, (0, cp - cout))
    scale_col = (gamma * inv_std).reshape(cp, 1).astype(jnp.float32)
    shift_col = (beta - mean * gamma * inv_std).reshape(cp, 1).astype(jnp.float32)

    # ---- Phase 2: recompute conv tile + fused BN + ReLU, channel-compact output ----
    # Recomputing the cheap K=36 matmul avoids an HBM round trip of the conv output; the
    # [CP, TM] store writes only cout real channels per pixel (lane-dense along M).
    out_cm = pl.pallas_call(
        conv_bn_relu_kernel,
        grid=(num_tiles,),
        in_specs=[pl.BlockSpec((k, tm), lambda i: (0, i)),
                  pl.BlockSpec((cp, k), lambda i: (0, 0)),
                  pl.BlockSpec((cp, 1), lambda i: (0, 0)),
                  pl.BlockSpec((cp, 1), lambda i: (0, 0))],
        out_specs=pl.BlockSpec((cp, tm), lambda i: (0, i)),
        out_shape=jax.ShapeDtypeStruct((cp, m_pad), out_dtype),
        compiler_params=pltpu.CompilerParams(
            dimension_semantics=("parallel",),    # independent tiles -> megacore sharding
            vmem_limit_bytes=vmem_limit),
    )(patches_t, w_t, scale_col, shift_col)

    # Channel-major -> NCHW, on compact data only.
    out = out_cm[:cout, :m].reshape(cout, n, ho, wo)
    return jnp.transpose(out, (1, 0, 2, 3))


# ------------------------------ f32 reference -------------------------------

def reference_forward(x_nchw, conv_w, conv_b, bn_gamma, bn_beta):
    """Plain-JAX reference mirroring PyTorch semantics (bias included)."""
    y = jax.lax.conv_general_dilated(
        x_nchw, conv_w, window_strides=(1, 1), padding="VALID",
        dimension_numbers=("NCHW", "OIHW", "NCHW"),
        preferred_element_type=jnp.float32,
    ) + conv_b.reshape(1, -1, 1, 1)
    mean = jnp.mean(y, axis=(0, 2, 3), keepdims=True)
    var = jnp.mean((y - mean) ** 2, axis=(0, 2, 3), keepdims=True)
    xhat = (y - mean) / jnp.sqrt(var + BN_EPS)
    out = xhat * bn_gamma.reshape(1, -1, 1, 1) + bn_beta.reshape(1, -1, 1, 1)
    return jnp.maximum(out, 0.0)


if __name__ == "__main__":
    # Small shapes consistent with the module: batch=2, in_channels=4, out_channels=8,
    # spatial=16x16, kernel_size=3 (stride=1, padding=0 -> 14x14 output).
    N, CIN, H, W = 2, 4, 16, 16
    COUT, KH, KW = 8, 3, 3

    key = jax.random.PRNGKey(0)
    kx, kw_, kb, kg, kbt = jax.random.split(key, 5)

    x = jax.random.normal(kx, (N, CIN, H, W), dtype=jnp.float32)

    fan_in = CIN * KH * KW
    bound = 1.0 / (fan_in ** 0.5)
    conv_w = jax.random.uniform(kw_, (COUT, CIN, KH, KW), jnp.float32, -bound, bound)
    conv_b = jax.random.uniform(kb, (COUT,), jnp.float32, -bound, bound)
    # Non-trivial affine params to exercise the fused scale/shift path.
    bn_gamma = 1.0 + 0.1 * jax.random.normal(kg, (COUT,), jnp.float32)
    bn_beta = 0.1 * jax.random.normal(kbt, (COUT,), jnp.float32)

    # tm=128 exercises the multi-tile pipeline, the 2-shard phase-1 grid and the padded
    # tail at this small shape (M=392 -> 4 tiles, 2 per shard); production uses tm=2048.
    out = conv_block_forward(x, conv_w, conv_b, bn_gamma, bn_beta, tm=128)
    out = jax.block_until_ready(out)

    ref = reference_forward(x, conv_w, conv_b, bn_gamma, bn_beta)
    assert out.shape == (N, COUT, H - KH + 1, W - KW + 1), out.shape
    # bf16 MXU operands with f32 accumulation vs. an f32 reference -> modest tolerance.
    assert jnp.allclose(out, ref, atol=2e-2, rtol=2e-2), float(jnp.max(jnp.abs(out - ref)))

    print("KERNEL_OK")
</pallas_src>

<mosaic_0001>
module attributes {stable_mosaic.version = 11 : i64} {
  func.func @conv_stats_kernel(%arg0: i32, %arg1: i32, %arg2: memref<36x128xbf16, #tpu.memory_space<vmem>>, %arg3: memref<8x36xbf16, #tpu.memory_space<vmem>>, %arg4: memref<1x8x128xf32, #tpu.memory_space<vmem>>, %arg5: memref<1x8x128xf32, #tpu.memory_space<vmem>>) attributes {dimension_semantics = [#tpu.dimension_semantics<parallel>, #tpu.dimension_semantics<arbitrary>], iteration_bounds = array<i64: 2, 2>, scalar_prefetch = 0 : i64, scratch_operands = 0 : i64, tpu.core_type = #tpu.core_type<tc>, window_params = [{transform_indices = @transform_0, window_bounds = array<i64: 36, 128>}, {pipeline_mode = #tpu.pipeline_mode<synchronous>, transform_indices = @transform_1, window_bounds = array<i64: 8, 36>}, {transform_indices = @transform_2, window_bounds = array<i64: 1, 8, 128>}, {transform_indices = @transform_3, window_bounds = array<i64: 1, 8, 128>}]} {
    %c0_i32 = arith.constant 0 : i32
    %0 = arith.cmpi eq, %arg1, %c0_i32 : i32
    %1 = arith.extui %0 : i1 to i32
    %c0_i32_0 = arith.constant 0 : i32
    %2 = arith.cmpi ne, %1, %c0_i32_0 : i32
    scf.if %2 {
      %cst_18 = arith.constant 0.000000e+00 : f32
      %23 = vector.broadcast %cst_18 : f32 to vector<1x8x128xf32>
      %c0_19 = arith.constant 0 : index
      %c0_20 = arith.constant 0 : index
      %c0_21 = arith.constant 0 : index
      %24 = vector.load %arg4[%c0_19, %c0_20, %c0_21] : memref<1x8x128xf32, #tpu.memory_space<vmem>>, vector<1x8x128xf32>
      tpu.vector_store %arg4[%c0_19, %c0_20, %c0_21], %23 {strides = array<i32>} : memref<1x8x128xf32, #tpu.memory_space<vmem>>, vector<1x8x128xf32>,
      %cst_22 = arith.constant 0.000000e+00 : f32
      %25 = vector.broadcast %cst_22 : f32 to vector<1x8x128xf32>
      %c0_23 = arith.constant 0 : index
      %c0_24 = arith.constant 0 : index
      %c0_25 = arith.constant 0 : index
      %26 = vector.load %arg5[%c0_23, %c0_24, %c0_25] : memref<1x8x128xf32, #tpu.memory_space<vmem>>, vector<1x8x128xf32>
      tpu.vector_store %arg5[%c0_23, %c0_24, %c0_25], %25 {strides = array<i32>} : memref<1x8x128xf32, #tpu.memory_space<vmem>>, vector<1x8x128xf32>,
    } else {
    }
    %c0 = arith.constant 0 : index
    %c0_1 = arith.constant 0 : index
    %3 = vector.load %arg3[%c0, %c0_1] : memref<8x36xbf16, #tpu.memory_space<vmem>>, vector<8x36xbf16>
    %c0_2 = arith.constant 0 : index
    %c0_3 = arith.constant 0 : index
    %4 = vector.load %arg2[%c0_2, %c0_3] : memref<36x128xbf16, #tpu.memory_space<vmem>>, vector<36x128xbf16>
    %cst = arith.constant dense<0.000000e+00> : vector<8x128xf32>
    %5 = tpu.matmul %3, %4, %cst {dimension_numbers = #tpu.dot_dimension_numbers<[1], [0], [0], [1], [0, 0, 1, 1], [], []>} : vector<8x36xbf16>, vector<36x128xbf16>, vector<8x128xf32> -> vector<8x128xf32>
    %cst_4 = arith.constant 0.000000e+00 : f32
    %6 = vector.broadcast %cst_4 : f32 to vector<8x128xf32>
    %cst_5 = arith.constant 0.000000e+00 : f32
    %7 = vector.broadcast %cst_5 : f32 to vector<8x128xf32>
    %8 = arith.addf %6, %5 : vector<8x128xf32>
    %9 = arith.mulf %5, %5 : vector<8x128xf32>
    %10 = arith.addf %7, %9 : vector<8x128xf32>
    %c0_6 = arith.constant 0 : index
    %c0_7 = arith.constant 0 : index
    %c0_8 = arith.constant 0 : index
    %11 = vector.load %arg4[%c0_6, %c0_7, %c0_8] : memref<1x8x128xf32, #tpu.memory_space<vmem>>, vector<1x8x128xf32>
    %12 = vector.shape_cast %11 : vector<1x8x128xf32> to vector<8x128xf32>
    %13 = arith.addf %12, %8 : vector<8x128xf32>
    %c0_9 = arith.constant 0 : index
    %c0_10 = arith.constant 0 : index
    %c0_11 = arith.constant 0 : index
    %14 = vector.load %arg4[%c0_9, %c0_10, %c0_11] : memref<1x8x128xf32, #tpu.memory_space<vmem>>, vector<1x8x128xf32>
    %15 = vector.shape_cast %14 : vector<1x8x128xf32> to vector<8x128xf32>
    %16 = vector.shape_cast %13 : vector<8x128xf32> to vector<1x8x128xf32>
    tpu.vector_store %arg4[%c0_9, %c0_10, %c0_11], %16 {strides = array<i32>} : memref<1x8x128xf32, #tpu.memory_space<vmem>>, vector<1x8x128xf32>,
    %c0_12 = arith.constant 0 : index
    %c0_13 = arith.constant 0 : index
    %c0_14 = arith.constant 0 : index
    %17 = vector.load %arg5[%c0_12, %c0_13, %c0_14] : memref<1x8x128xf32, #tpu.memory_space<vmem>>, vector<1x8x128xf32>
    %18 = vector.shape_cast %17 : vector<1x8x128xf32> to vector<8x128xf32>
    %19 = arith.addf %18, %10 : vector<8x128xf32>
    %c0_15 = arith.constant 0 : index
    %c0_16 = arith.constant 0 : index
    %c0_17 = arith.constant 0 : index
    %20 = vector.load %arg5[%c0_15, %c0_16, %c0_17] : memref<1x8x128xf32, #tpu.memory_space<vmem>>, vector<1x8x128xf32>
    %21 = vector.shape_cast %20 : vector<1x8x128xf32> to vector<8x128xf32>
    %22 = vector.shape_cast %19 : vector<8x128xf32> to vector<1x8x128xf32>
    tpu.vector_store %arg5[%c0_15, %c0_16, %c0_17], %22 {strides = array<i32>} : memref<1x8x128xf32, #tpu.memory_space<vmem>>, vector<1x8x128xf32>,
    return
  }
  func.func @transform_0(%arg0: i32, %arg1: i32) -> (i32, i32) {
    %c2_i32 = arith.constant 2 : i32
    %0 = arith.muli %arg0, %c2_i32 : i32
    %1 = arith.addi %0, %arg1 : i32
    %c0_i32 = arith.constant 0 : i32
    %c0_i32_0 = arith.constant 0 : i32
    return %c0_i32, %1 : i32, i32
  }
  func.func @transform_1(%arg0: i32, %arg1: i32) -> (i32, i32) {
    %c0_i32 = arith.constant 0 : i32
    %c0_i32_0 = arith.constant 0 : i32
    %c0_i32_1 = arith.constant 0 : i32
    return %c0_i32, %c0_i32_0 : i32, i32
  }
  func.func @transform_2(%arg0: i32, %arg1: i32) -> (i32, i32, i32) {
    %c0_i32 = arith.constant 0 : i32
    %c0_i32_0 = arith.constant 0 : i32
    %c0_i32_1 = arith.constant 0 : i32
    return %arg0, %c0_i32, %c0_i32_0 : i32, i32, i32
  }
  func.func @transform_3(%arg0: i32, %arg1: i32) -> (i32, i32, i32) {
    %c0_i32 = arith.constant 0 : i32
    %c0_i32_0 = arith.constant 0 : i32
    %c0_i32_1 = arith.constant 0 : i32
    return %arg0, %c0_i32, %c0_i32_0 : i32, i32, i32
  }
}

</mosaic_0001>

<llo_original>
// kernel: tpu_custom_call.1
$region0: #{tpu_custom_call.1}
  #allocation0 [shape = 'u32[]', space=smem, size = 0x4, offset = 0x4, fixed_abs, tag = 'smem constant byte address 0x4 - core index']
  #allocation1 [shape = 'u32[144,128]{1,0:T(1,128)}', space=vmem, size = 0x12000, scoped, tag = 'internal scratch']
  %s0 = inlined_call_operand.hbm [shape: bf16[36,512], index: 0, kind: input, shape index: {}]
  %s1 = inlined_call_operand.hbm [shape: bf16[8,36], index: 1, kind: input, shape index: {}]
  %s2 = inlined_call_operand.hbm [shape: f32[2,8,128], index: 2, kind: output, shape index: {0}]
  %s3 = inlined_call_operand.hbm [shape: f32[2,8,128], index: 3, kind: output, shape index: {1}]
  %4 = xla_tuple %s2, %s3
  %s5 = sld [smem:[#allocation0]]
  $region61: #{tpu_custom_call.1} parent=0
    _
  %s7 = ssub.s32 1, %s5
  %s8 = scalar_select 0, %s7, %s5
  $region1: #{tpu_custom_call.1} parent=0
    #allocation2 [shape = 'u8[20480]{0}', space=vmem, size = 0x5000, scoped, tag = 'input window, operand 0']
    #allocation3 [shape = 's32[2]{0}', space=sflag, size = 0x8, scoped, tag = 'scoped memory for tpu_custom_call.1']
    #allocation4 [shape = 's32[2]{0}', space=sflag, size = 0x8, scoped, tag = 'scoped memory for tpu_custom_call.1']
    #allocation5 [shape = 'u8[2048]{0}', space=vmem, size = 0x800, scoped, tag = 'input window, operand 1, single buffered']
    #allocation6 [shape = 's32[1]{0}', space=sflag, size = 0x4, scoped, tag = 'scoped memory for tpu_custom_call.1']
    #allocation7 [shape = 'u8[8192]{0}', space=vmem, size = 0x2000, scoped, tag = 'output window, operand 0']
    #allocation8 [shape = 'u8[8192]{0}', space=vmem, size = 0x2000, scoped, tag = 'output window, operand 1']
    #allocation9 [shape = 's32[2]{0}', space=sflag, size = 0x8, scoped, tag = 'scoped memory for tpu_custom_call.1']
    %9 = vsyncpa [#allocation3], 0
    %s10 = scalar_lea.sflag [#allocation3], 1
    %11 = vsyncpa %s10, 0
    %12 = vsyncpa [#allocation6], 0
    %13 = vsyncpa [#allocation4], 0
    %s14 = scalar_lea.sflag [#allocation4], 1
    %15 = vsyncpa %s14, 0
    %16 = vsyncpa [#allocation9], 0
    %s17 = scalar_lea.sflag [#allocation9], 1
    %18 = vsyncpa %s17, 0
    loop: start=0, step=1, limit=6
    $region2: #{tpu_custom_call.1} parent=1 // loop_pre_header
      _
    $region3: #{tpu_custom_call.1} parent=1 // loop_header
      %s20 = sphi 0, %s24
      %p21 = scmp.ge.s32.totalorder %s20, 6
      %s27 = sphi 0, %s39
      %s28 = sphi 0, %s35
      %s29 = sphi 0, %s27
      %s30 = sphi 0, %s28
      %s31 = sphi 0, %s29
      %s32 = sphi 0, %s30
      %s46 = sphi 0, %s48
      %s49 = sphi 0, %s46
      %s50 = sphi 0, %s49
      %s66 = sphi 0, %s50
      %s70 = sphi 0, %s70
      %s72 = sphi 0, %s70
      %s73 = sphi 0, %s72
      %s87 = sphi 0, %s73
      %s93 = sphi 0, %s95
      %s96 = sphi 0, %s93
      %s97 = sphi 0, %s96
      %s113 = sphi 0, %s97
      %s119 = sphi 0, %s121
      %s122 = sphi 0, %s119
      %s123 = sphi 0, %s122
      %s139 = sphi 0, %s123
    $region4: #{tpu_custom_call.1} parent=1 // loop_header_branch
      %23 = sbr.rel (%p21) target = $region8
    $region5: #{tpu_custom_call.1} parent=1 // loop_body
      %s25 = ssub.s32 %s20, 1
      %s26 = ssub.s32 %s20, 2
      %s33 = sadd.s32 1, %s28
      %p34 = scmp.ge.s32.totalorder %s33, 2
      %s35 = scalar_select %p34, 0, %s33
      %s36 = sadd.s32 1, %s27
      %s37 = scalar_select %p34, %s36, %s27
      %p38 = scmp.ge.s32.totalorder %s37, 2
      %s39 = scalar_select %p38, 0, %s37
      %s40 = smul.u32 %s27, 2
      %s41 = sadd.s32 %s40, %s28
      %s42 = smul.u32 %s39, 2
      %s43 = sadd.s32 %s42, %s35
      %s44 = ssub.s32 %s41, %s43
      %p45 = scmp.eq.s32.totalorder %s44, 0
      %s47 = sadd.s32 %s46, 1
      %s48 = scalar_select %p45, %s46, %s47
      %p51 = pneg %p45
      %p52 = scmp.eq.s32.totalorder %s20, 3
      %p53 = por %p51, %p52
      %p54 = scmp.ne.s32.totalorder %s46, %s49
      %p55 = scmp.eq.s32.totalorder %s20, 0
      %p56 = por %p54, %p55
      %p57 = scmp.ne.s32.totalorder %s46, %s49
      %p58 = scmp.eq.s32.totalorder %s25, 3
      %p59 = por %p57, %p58
      %p60 = scmp.ne.s32.totalorder %s49, %s50
      %p61 = scmp.eq.s32.totalorder %s25, 0
      %p62 = por %p60, %p61
      %p63 = scmp.ne.s32.totalorder %s49, %s50
      %p64 = scmp.eq.s32.totalorder %s26, 3
      %p65 = por %p63, %p64
      %p67 = scmp.ne.s32.totalorder %s50, %s66
      %p68 = scmp.eq.s32.totalorder %s26, 0
      %p69 = por %p67, %p68
      %s71 = sadd.s32 %s70, 1
      %p74 = scmp.eq.s32.totalorder %s20, 3
      %p75 = scmp.ne.s32.totalorder %s70, %s72
      %p76 = scmp.eq.s32.totalorder %s20, 0
      %p77 = por %p75, %p76
      %p78 = scmp.ne.s32.totalorder %s70, %s72
      %p79 = scmp.eq.s32.totalorder %s25, 3
      %p80 = por %p78, %p79
      %p81 = scmp.ne.s32.totalorder %s72, %s73
      %p82 = scmp.eq.s32.totalorder %s25, 0
      %p83 = por %p81, %p82
      %p84 = scmp.ne.s32.totalorder %s72, %s73
      %p85 = scmp.eq.s32.totalorder %s26, 3
      %p86 = por %p84, %p85
      %p88 = scmp.ne.s32.totalorder %s73, %s87
      %p89 = scmp.eq.s32.totalorder %s26, 0
      %p90 = por %p88, %p89
      %s91 = ssub.s32 %s27, %s39
      %p92 = scmp.eq.s32.totalorder %s91, 0
      %s94 = sadd.s32 %s93, 1
      %s95 = scalar_select %p92, %s93, %s94
      %p98 = pneg %p92
      %p99 = scmp.eq.s32.totalorder %s20, 3
      %p100 = por %p98, %p99
      %p101 = scmp.ne.s32.totalorder %s93, %s96
      %p102 = scmp.eq.s32.totalorder %s20, 0
      %p103 = por %p101, %p102
      %p104 = scmp.ne.s32.totalorder %s93, %s96
      %p105 = scmp.eq.s32.totalorder %s25, 3
      %p106 = por %p104, %p105
      %p107 = scmp.ne.s32.totalorder %s96, %s97
      %p108 = scmp.eq.s32.totalorder %s25, 0
      %p109 = por %p107, %p108
      %p110 = scmp.ne.s32.totalorder %s96, %s97
      %p111 = scmp.eq.s32.totalorder %s26, 3
      %p112 = por %p110, %p111
      %p114 = scmp.ne.s32.totalorder %s97, %s113
      %p115 = scmp.eq.s32.totalorder %s26, 0
      %p116 = por %p114, %p115
      %s117 = ssub.s32 %s27, %s39
      %p118 = scmp.eq.s32.totalorder %s117, 0
      %s120 = sadd.s32 %s119, 1
      %s121 = scalar_select %p118, %s119, %s120
      %p124 = pneg %p118
      %p125 = scmp.eq.s32.totalorder %s20, 3
      %p126 = por %p124, %p125
      %p127 = scmp.ne.s32.totalorder %s119, %s122
      %p128 = scmp.eq.s32.totalorder %s20, 0
      %p129 = por %p127, %p128
      %p130 = scmp.ne.s32.totalorder %s119, %s122
      %p131 = scmp.eq.s32.totalorder %s25, 3
      %p132 = por %p130, %p131
      %p133 = scmp.ne.s32.totalorder %s122, %s123
      %p134 = scmp.eq.s32.totalorder %s25, 0
      %p135 = por %p133, %p134
      %p136 = scmp.ne.s32.totalorder %s122, %s123
      %p137 = scmp.eq.s32.totalorder %s26, 3
      %p138 = por %p136, %p137
      %p140 = scmp.ne.s32.totalorder %s123, %s139
      %p141 = scmp.eq.s32.totalorder %s26, 0
      %p142 = por %p140, %p141
      %p143 = scmp.le.s32.totalorder 1, %s20
      %p144 = scmp.lt.s32.totalorder %s20, 5
      %p145 = pnand %p143, %p144
      %p146 = pneg %p145
      // Predicated region
      $region9: #{tpu_custom_call.1} parent=5 // pred_check
        _
      $region10: #{tpu_custom_call.1} parent=5 // pred_check_branch
        %148 = sbr.rel (%p145) target = $region12
      $region11: #{tpu_custom_call.1} parent=5 // pred_region
        %s149 = ssub.s32 %s20, 1
        // Predicated region
        $region13: #{tpu_custom_call.1} parent=11 // pred_check
          %p150 = pneg %p83
        $region14: #{tpu_custom_call.1} parent=11 // pred_check_branch
          %152 = sbr.rel (%p150) target = $region16
        $region15: #{tpu_custom_call.1} parent=11 // pred_region
          %s154 = ssub.s32 64, 64
          %155 = vsyncadd [#allocation6], %s154
          %s157 = sshll.u32 [#allocation5], 4
          %s158 = int_to_ptr.vmem [resolvable:$true] %s157
          %160 = dma.hbm_to_vmem [thread:$0]  %s1, 64, %s158, [#allocation6]
        $region16: #{tpu_custom_call.1} parent=11 // pred_fallthru
          _
      $region12: #{tpu_custom_call.1} parent=5 // pred_fallthru
        _
      %p161 = scmp.lt.s32.totalorder %s20, 4
      // Predicated region
      $region17: #{tpu_custom_call.1} parent=5 // pred_check
        %p162 = pneg %p161
      $region18: #{tpu_custom_call.1} parent=5 // pred_check_branch
        %164 = sbr.rel (%p162) target = $region20
      $region19: #{tpu_custom_call.1} parent=5 // pred_region
        // Predicated region
        $region21: #{tpu_custom_call.1} parent=19 // pred_check
          %p165 = pneg %p56
        $region22: #{tpu_custom_call.1} parent=19 // pred_check_branch
          %167 = sbr.rel (%p165) target = $region24
        $region23: #{tpu_custom_call.1} parent=19 // pred_region
          %s168 = sand.u32 %s46, 1
          %s169 = scalar_lea.sflag [#allocation3], %s168
          %s170 = sand.u32 %s46, 1
          %s171 = smul.addr %s170, 20
          %s172 = scalar_lea.vmem [#allocation2], %s171
          %s173 = smul.u32 %s27, 2
          %s174 = sadd.s32 %s173, %s28
          %s176 = ssub.s32 320, 320
          %177 = vsyncadd %s169, %s176
          %s178 = smul.addr %s174, 64
          %s179 = scalar_lea.hbm %s0, %s178
          %s180 = sshll.u32 %s172, 4
          %s181 = int_to_ptr.vmem [resolvable:$true] %s180
          %186 = dma.hbm_to_vmem [thread:$0]  %s179, 320, %s181, %s169, 256, 64, 4
        $region24: #{tpu_custom_call.1} parent=19 // pred_fallthru
          _
      $region20: #{tpu_custom_call.1} parent=5 // pred_fallthru
        _
      %p187 = scmp.le.s32.totalorder 1, %s20
      %p188 = scmp.lt.s32.totalorder %s20, 5
      %p189 = pnand %p187, %p188
      %p190 = pneg %p189
      // Predicated region
      $region25: #{tpu_custom_call.1} parent=5 // pred_check
        _
      $region26: #{tpu_custom_call.1} parent=5 // pred_check_branch
        %192 = sbr.rel (%p189) target = $region28
      $region27: #{tpu_custom_call.1} parent=5 // pred_region
        %s193 = ssub.s32 %s20, 1
        %s194 = sand.u32 %s49, 1
        %s195 = scalar_lea.sflag [#allocation3], %s194
        %s196 = sand.u32 %s49, 1
        %s197 = smul.addr %s196, 20
        %s198 = scalar_lea.vmem [#allocation2], %s197
        // Predicated region
        $region29: #{tpu_custom_call.1} parent=27 // pred_check
          %p199 = pneg %p62
        $region30: #{tpu_custom_call.1} parent=27 // pred_check_branch
          %201 = sbr.rel (%p199) target = $region32
        $region31: #{tpu_custom_call.1} parent=27 // pred_region
          %202 = dma.done %s195, 320
        $region32: #{tpu_custom_call.1} parent=27 // pred_fallthru
          _
        // Predicated region
        $region33: #{tpu_custom_call.1} parent=27 // pred_check
          %p203 = pneg %p83
        $region34: #{tpu_custom_call.1} parent=27 // pred_check_branch
          %205 = sbr.rel (%p203) target = $region36
        $region35: #{tpu_custom_call.1} parent=27 // pred_region
          %206 = dma.done [#allocation6], 64
        $region36: #{tpu_custom_call.1} parent=27 // pred_fallthru
          _
        %s207 = sand.u32 %s49, 1
        %s208 = scalar_lea.sflag [#allocation3], %s207
        %s209 = sand.u32 %s49, 1
        %s210 = smul.addr %s209, 20
        %s211 = scalar_lea.vmem [#allocation2], %s210
        %p212 = pneg %p62
        %p213 = pneg %p59
        %p214 = pneg %p83
        %p215 = pneg %p80
        %p216 = pneg %p109
        %p217 = pneg %p106
        %s218 = sand.u32 %s96, 1
        %s219 = scalar_lea.sflag [#allocation4], %s218
        %s220 = sand.u32 %s96, 1
        %s221 = smul.addr %s220, 8
        %s222 = scalar_lea.vmem [#allocation7], %s221
        %p223 = pneg %p135
        %p224 = pneg %p132
        %s225 = sand.u32 %s122, 1
        %s226 = scalar_lea.sflag [#allocation9], %s225
        %s227 = sand.u32 %s122, 1
        %s228 = smul.addr %s227, 8
        %s229 = scalar_lea.vmem [#allocation8], %s228
        %s230 = smul.u32 %s29, 2
        %s231 = sadd.s32 %s230, %s30
        %p233 = scmp.eq.s32.totalorder %s30, 0
        // Predicated region
        $region37: #{tpu_custom_call.1} parent=27 // pred_check
          %p234 = pneg %p233
        $region38: #{tpu_custom_call.1} parent=27 // pred_check_branch
          %236 = sbr.rel (%p234) target = $region40
        $region39: #{tpu_custom_call.1} parent=27 // pred_region
          %237 = vst [vmem:[%s222] sm:$0xff] 0.0
          %238 = vst [vmem:[%s229] sm:$0xff] 0.0
        $region40: #{tpu_custom_call.1} parent=27 // pred_fallthru
          _
        %v239 = vld [vmem:[#allocation5] sm:$0xf]
        %v240 = vld [vmem:[%s198] sm:$0xf]
        %v241 = vld [vmem:[%s198 + $0x4] sm:$0xf]
        %v242 = vld [vmem:[%s198 + $0x8] sm:$0xf]
        %v243 = vld [vmem:[%s198 + $0xc] sm:$0xf]
        %v244 = vld [vmem:[%s198 + $0x10] sm:$0x3]
        %v250 = vunpack.c.l.b16 %v240
        %v251 = vunpack.c.l.b16 %v241
        %v252 = vunpack.c.l.b16 %v242
        %v253 = vunpack.c.l.b16 %v243
        %v254 = vunpack.c.l.b16 %v244
        %v255 = vpack.c.b16 %v251, %v250
        %v256 = vpack.c.b16 %v253, %v252
        %v257 = vpack.c.b16 %v254, %v254
        %vm260 = vcmask 293888
        %v262 = vsel %vm260, %v239, 0
        %vm264 = vcmask 1041408
        %v266 = vsel %vm264, %v257, 0
        %268 = vmatprep.subr.bf16.mxu0 0
        %269 = vmatpush1.bf16.msra.mxu0 %v255
        %270 = vmatprep.subr.bf16.mxu0 0
        %271 = vmatpush1.bf16.msra.mxu0 %v256
        %272 = vmatprep.subr.bf16.mxu0 0
        %273 = vmatpush1.bf16.msra.mxu0 %v266
        %274 = vmatprep.subr.bf16.mxu0 0
        %275 = vmatpush1.bf16.msra.mxu0 0
        %276 = vmatprep.subr.bf16.mxu0 0
        %277 = vmatpush1.bf16.msra.mxu0 0
        %278 = vmatprep.subr.bf16.mxu0 0
        %279 = vmatpush1.bf16.msra.mxu0 0
        %280 = vmatprep.subr.bf16.mxu0 0
        %281 = vmatpush1.bf16.msra.mxu0 0
        %282 = vmatprep.subr.bf16.mxu0 0
        %283 = vmatpush1.bf16.msra.mxu0 0
        %284 = vmatprep.subr.bf16.mxu0 0
        %285 = vmatpush1.bf16.msra.mxu0 0
        %286 = vmatprep.subr.bf16.mxu0 0
        %287 = vmatpush1.bf16.msra.mxu0 0
        %288 = vmatprep.subr.bf16.mxu0 0
        %289 = vmatpush1.bf16.msra.mxu0 0
        %290 = vmatprep.subr.bf16.mxu0 0
        %291 = vmatpush1.bf16.msra.mxu0 0
        %292 = vmatprep.subr.bf16.mxu0 0
        %293 = vmatpush1.bf16.msra.mxu0 0
        %294 = vmatprep.subr.bf16.mxu0 0
        %295 = vmatpush1.bf16.msra.mxu0 0
        %296 = vmatprep.subr.bf16.mxu0 0
        %297 = vmatpush1.bf16.msra.mxu0 0
        %298 = vmatprep.subr.bf16.mxu0 0
        %299 = vmatpush1.bf16.msra.mxu0 0
        %300 = vmatprep.mubr.bf16.mxu0 0
        %301 = vmatmul.mubr.bf16.gmra.mrb[0].mxu0 %v262
        %v302 = vpop.f32.mrb[0].mxu0
        %v303 = vadd.f32 0.0, %v302
        %v304 = vpop.f32.mrb[0].mxu0
        %v305 = vpop.f32.mrb[0].mxu0
        %v306 = vpop.f32.mrb[0].mxu0
        %307 = vdwg.mxu0
        %v308 = vadd.f32 %v303, 0.0
        %v309 = vmul.f32 %v303, %v303
        %v310 = vadd.f32 %v309, 0.0
        %v311 = vld [vmem:[%s222] sm:$0xff]
        %v312 = vadd.f32 %v311, %v308
        %313 = vst [vmem:[%s222] sm:$0xff] %v312
        %v314 = vld [vmem:[%s229] sm:$0xff]
        %v315 = vadd.f32 %v314, %v310
        %316 = vst [vmem:[%s229] sm:$0xff] %v315
        %s317 = sand.u32 %s96, 1
        %s318 = scalar_lea.sflag [#allocation4], %s317
        %s319 = sand.u32 %s96, 1
        %s320 = smul.addr %s319, 8
        %s321 = scalar_lea.vmem [#allocation7], %s320
        %s322 = sand.u32 %s122, 1
        %s323 = scalar_lea.sflag [#allocation9], %s322
        %s324 = sand.u32 %s122, 1
        %s325 = smul.addr %s324, 8
        %s326 = scalar_lea.vmem [#allocation8], %s325
        // Predicated region
        $region41: #{tpu_custom_call.1} parent=27 // pred_check
          %p327 = pneg %p106
        $region42: #{tpu_custom_call.1} parent=27 // pred_check_branch
          %329 = sbr.rel (%p327) target = $region44
        $region43: #{tpu_custom_call.1} parent=27 // pred_region
          %s331 = ssub.s32 128, 128
          %332 = vsyncadd %s318, %s331
          %s333 = smul.addr %s29, 128
          %s334 = scalar_lea.hbm %s2, %s333
          %s336 = sshll.u32 %s321, 4
          %s337 = int_to_ptr.vmem [resolvable:$true] %s336
          %339 = dma.vmem_to_hbm [thread:$0]  %s337, 128, %s334, %s318
        $region44: #{tpu_custom_call.1} parent=27 // pred_fallthru
          _
        // Predicated region
        $region45: #{tpu_custom_call.1} parent=27 // pred_check
          %p340 = pneg %p132
        $region46: #{tpu_custom_call.1} parent=27 // pred_check_branch
          %342 = sbr.rel (%p340) target = $region48
        $region47: #{tpu_custom_call.1} parent=27 // pred_region
          %s344 = ssub.s32 128, 128
          %345 = vsyncadd %s323, %s344
          %s346 = smul.addr %s29, 128
          %s347 = scalar_lea.hbm %s3, %s346
          %s349 = sshll.u32 %s326, 4
          %s350 = int_to_ptr.vmem [resolvable:$true] %s349
          %352 = dma.vmem_to_hbm [thread:$0]  %s350, 128, %s347, %s323
        $region48: #{tpu_custom_call.1} parent=27 // pred_fallthru
          _
      $region28: #{tpu_custom_call.1} parent=5 // pred_fallthru
        _
      %p353 = scmp.le.s32.totalorder 2, %s20
      // Predicated region
      $region49: #{tpu_custom_call.1} parent=5 // pred_check
        %p354 = pneg %p353
      $region50: #{tpu_custom_call.1} parent=5 // pred_check_branch
        %356 = sbr.rel (%p354) target = $region52
      $region51: #{tpu_custom_call.1} parent=5 // pred_region
        %s357 = ssub.s32 %s20, 2
        // Predicated region
        $region53: #{tpu_custom_call.1} parent=51 // pred_check
          %p358 = pneg %p112
        $region54: #{tpu_custom_call.1} parent=51 // pred_check_branch
          %360 = sbr.rel (%p358) target = $region56
        $region55: #{tpu_custom_call.1} parent=51 // pred_region
          %s361 = sand.u32 %s97, 1
          %s362 = scalar_lea.sflag [#allocation4], %s361
          %s363 = sand.u32 %s97, 1
          %s364 = smul.addr %s363, 8
          %s365 = scalar_lea.vmem [#allocation7], %s364
          %366 = dma.done %s362, 128
        $region56: #{tpu_custom_call.1} parent=51 // pred_fallthru
          _
        // Predicated region
        $region57: #{tpu_custom_call.1} parent=51 // pred_check
          %p367 = pneg %p138
        $region58: #{tpu_custom_call.1} parent=51 // pred_check_branch
          %369 = sbr.rel (%p367) target = $region60
        $region59: #{tpu_custom_call.1} parent=51 // pred_region
          %s370 = sand.u32 %s123, 1
          %s371 = scalar_lea.sflag [#allocation9], %s370
          %s372 = sand.u32 %s123, 1
          %s373 = smul.addr %s372, 8
          %s374 = scalar_lea.vmem [#allocation8], %s373
          %375 = dma.done %s371, 128
        $region60: #{tpu_custom_call.1} parent=51 // pred_fallthru
          _
      $region52: #{tpu_custom_call.1} parent=5 // pred_fallthru
        _
    $region6: #{tpu_custom_call.1} parent=1 // loop_footer
      %s24 = sadd.s32 1, %s20
    $region7: #{tpu_custom_call.1} parent=1 // loop_footer_branch
      %19 = sbr.rel target = $region3
    $region8: #{tpu_custom_call.1} parent=1 // loop_exit
      _
    %376 = vsyncpa [#allocation3], 1
    %s377 = scalar_lea.sflag [#allocation3], 1
    %378 = vsyncpa %s377, 1
    %379 = vsyncpa [#allocation6], 1
    %380 = vsyncpa [#allocation4], 1
    %s381 = scalar_lea.sflag [#allocation4], 1
    %382 = vsyncpa %s381, 1
    %383 = vsyncpa [#allocation9], 1
    %s384 = scalar_lea.sflag [#allocation9], 1
    %385 = vsyncpa %s384, 1

</llo_original>
